<compile_context>
chip_gen: v6e
topology: v6e:2x2x1
jax: 0.10.0
libtpu: 0.0.40
codegen_flags: <defaults>
</compile_context>

<pallas_src>
import functools
import math

import jax
import jax.numpy as jnp
from jax import lax
from jax.experimental import pallas as pl
from jax.experimental.pallas import tpu as pltpu


NUM_CORES = 2  # v7x megacore split; harmless serial split on single-TC chips.


def _round_up(v: int, m: int) -> int:
    return ((v + m - 1) // m) * m


def _vmem_capacity_bytes() -> int:
    try:
        return int(pltpu.get_tpu_info().vmem_capacity_bytes)
    except Exception:
        return 64 * 1024 * 1024  # conservative (v7x-sized) fallback


def _choose_row_tile(rows_per_core: int, n_cls: int, in_bytes: int,
                     budget: int, max_rows=None) -> int:
    # Row alignment matches the packed sublane tile: 8 (f32), 16 (bf16), 32 (i8).
    row_align = max(8, 32 // in_bytes)
    # Per-tile working set per row: 2 pipeline buffers of the native-dtype x
    # block, ~4 live f32 (TM, C) temporaries in-kernel, plus the lane-padded
    # (TM, 128) int32 target stream (2 buffers).
    per_row = n_cls * (2 * in_bytes + 4 * 4) + 2 * 128 * 4
    tm = budget // max(per_row, 1)
    # Adaptive cap: for small C keep tiles at >= ~1-2 MiB of input (per-step
    # overhead ~0.35 us would otherwise dominate), but never above 8192 rows.
    cap = min(8192, max(1024, (2 * 1024 * 1024) // max(n_cls * in_bytes, 1)))
    tm = min(tm, cap)
    if max_rows is not None:
        tm = min(tm, max(row_align, int(max_rows)))
    tm = max(row_align, (tm // row_align) * row_align)
    tm = min(tm, _round_up(rows_per_core, row_align))
    return tm


def _label_smooth_kernel(x_ref, t_ref, out_ref, *, smooth: float,
                         n_rows: int, tiles_per_core: int):
    c = pl.program_id(0)          # core (parallel) axis
    i = pl.program_id(1)          # per-core tile (arbitrary/reduction) axis
    tm, n_cls = x_ref.shape

    @pl.when(i == 0)
    def _init():
        out_ref[...] = jnp.zeros_like(out_ref)

    x = x_ref[...].astype(jnp.float32)            # (TM, C), cast in VMEM
    t = t_ref[...]                                # (TM, 1) int32

    ones_c = jnp.ones((n_cls, 1), jnp.float32)    # MXU reduction vector

    # VPU / XLU work: row max and the target-class select.
    m = jnp.max(x, axis=-1, keepdims=True)                          # (TM, 1)
    cls_idx = lax.broadcasted_iota(jnp.int32, (1, n_cls), 1)        # (1, C)
    x_t = jnp.sum(jnp.where(cls_idx == t, x, 0.0),
                  axis=-1, keepdims=True)                           # (TM, 1), exact f32

    # Dense row sums offloaded to the otherwise-idle MXU.  (Default matmul
    # precision may emulate f32 via bf16 passes on some generations; worst
    # case this perturbs lse by ~2e-3 — see the test tolerances below.)
    sum_x = jnp.dot(x, ones_c, preferred_element_type=jnp.float32)  # (TM, 1)
    e = jnp.exp(x - m)                                              # (TM, C), EUP
    # TODO(synk): optional v6e/v7x EUP relief: compute exp in bf16 if profiling
    # shows the EUP slot saturated (validate lse error first).
    sum_e = jnp.dot(e, ones_c, preferred_element_type=jnp.float32)  # (TM, 1)
    lse = jnp.log(sum_e)                                            # (TM, 1)

    logp_t = x_t - m - lse                    # log_softmax at the target class
    sum_logp = sum_x - n_cls * (m + lse)      # sum over classes of log_softmax
    off = smooth / (n_cls - 1)                # n_cls >= 2 guaranteed by wrapper
    loss = -((1.0 - smooth - off) * logp_t + off * sum_logp)        # (TM, 1)

    # Mask padded remainder rows and fully out-of-range (clamped) tiles.
    # Keep jnp.where here: padded rows may hold garbage (exp -> inf/nan) and
    # where() does not propagate NaN/Inf from the unselected branch.
    blk = c * tiles_per_core + i
    row_ids = lax.broadcasted_iota(jnp.int32, (tm, 1), 0) + blk * tm
    loss = jnp.where(row_ids < n_rows, loss, 0.0)

    out_ref[...] += jnp.sum(loss)             # per-core resident accumulator


def label_smooth_loss(x: jax.Array, target: jax.Array, smooth: float = 0.001,
                      max_rows_per_tile=None):
    """Equivalent of LabelSmoothLoss.forward(x, target)."""
    assert x.ndim - target.ndim == 1
    n_cls = x.shape[-1]
    if n_cls < 2:
        raise ValueError(
            "label_smooth_loss requires at least 2 classes (the PyTorch "
            "reference divides by n_cls - 1).")
    n_rows = int(math.prod(x.shape[:-1]))

    x2 = x.reshape(n_rows, n_cls)                       # native dtype, no upcast
    t2 = target.reshape(n_rows, 1).astype(jnp.int32)
    # TODO(synk): low priority — repack targets lane-dense if DMA traces show
    # descriptor overhead from the (TM, 1) int32 stream.

    # Generation-aware VMEM sizing.
    vmem_cap = _vmem_capacity_bytes()
    vmem_limit = max(32 * 1024 * 1024,
                     min(vmem_cap - 16 * 1024 * 1024, 100 * 1024 * 1024))
    budget = vmem_limit // 2                            # headroom for compiler temps

    in_bytes = jnp.dtype(x.dtype).itemsize
    rows_per_core = pl.cdiv(n_rows, NUM_CORES)
    tm = _choose_row_tile(rows_per_core, n_cls, in_bytes, budget,
                          max_rows=max_rows_per_tile)
    num_blocks = pl.cdiv(n_rows, tm)
    tiles_per_core = pl.cdiv(num_blocks, NUM_CORES)

    def row_block(c, i):
        # Clamp logical tiles past the end (when num_blocks % NUM_CORES != 0)
        # onto the last valid block; their rows are fully masked in-kernel.
        return jnp.minimum(c * tiles_per_core + i, num_blocks - 1)

    # TODO(synk): if a v5e profile shows exposed DMA at grid-step seams for f32
    # inputs, bump the x BlockSpec to pipeline_mode=pl.Buffered(3) and account
    # for the third buffer in _choose_row_tile.
    partials = pl.pallas_call(
        functools.partial(_label_smooth_kernel, smooth=float(smooth),
                          n_rows=n_rows, tiles_per_core=tiles_per_core),
        # One (8, 128)-padded f32 partial block per core (lane/sublane aligned).
        out_shape=jax.ShapeDtypeStruct((NUM_CORES, 8, 128), jnp.float32),
        grid_spec=pltpu.PrefetchScalarGridSpec(
            num_scalar_prefetch=0,
            grid=(NUM_CORES, tiles_per_core),
            in_specs=[
                pl.BlockSpec((tm, n_cls), lambda c, i: (row_block(c, i), 0)),
                pl.BlockSpec((tm, 1), lambda c, i: (row_block(c, i), 0)),
            ],
            # Block index depends only on the core axis -> resident per-core
            # accumulator across the "arbitrary" tile axis.
            out_specs=pl.BlockSpec((1, 8, 128), lambda c, i: (c, 0, 0)),
        ),
        compiler_params=pltpu.CompilerParams(
            dimension_semantics=("parallel", "arbitrary"),
            vmem_limit_bytes=int(vmem_limit),
        ),
    )(x2, t2)

    total = jnp.sum(partials[:, 0, 0])                  # per-core partial sums
    return total / n_rows                               # .sum(-1).mean()


def _reference(x, target, smooth=0.001):
    n_cls = x.shape[-1]
    logp = jax.nn.log_softmax(x.astype(jnp.float32), axis=-1)
    onehot = jax.nn.one_hot(target, n_cls, dtype=jnp.float32)
    w = onehot * (1.0 - smooth) + (1.0 - onehot) * (smooth / (n_cls - 1))
    return jnp.mean(-jnp.sum(w * logp, axis=-1))


if __name__ == "__main__":
    key = jax.random.PRNGKey(0)
    k1, k2, k3, k4, k5, k6 = jax.random.split(key, 6)

    # Tolerance note: with full-f32 matmul emulation the kernel matches the
    # reference to ~1e-6; 5e-3 additionally bounds the worst case where the
    # MXU row-sum dots are single-pass bf16-emulated (|d lse| <~ 2e-3).
    TOL = dict(atol=5e-3, rtol=5e-3)

    # Case 1: 3-D f32 input; 10 rows (not a multiple of 8) exercises the
    # partial-tile row masking with one tile on each of the two cores.
    x1 = jax.random.normal(k1, (2, 5, 32), dtype=jnp.float32)
    t1 = jax.random.randint(k2, (2, 5), 0, 32, dtype=jnp.int32)
    out1 = jax.block_until_ready(label_smooth_loss(x1, t1, smooth=0.001))
    ref1 = _reference(x1, t1, smooth=0.001)
    assert jnp.allclose(out1, ref1, **TOL), (out1, ref1)

    # Case 2: bf16 input stays bf16 on the HBM side (in-kernel f32 cast only);
    # a single row block, so the second core's clamped duplicate tile is fully
    # masked out of the sum.
    x2 = jax.random.normal(k3, (16, 128), dtype=jnp.bfloat16)
    t2 = jax.random.randint(k4, (16,), 0, 128, dtype=jnp.int32)
    out2 = jax.block_until_ready(label_smooth_loss(x2, t2, smooth=0.001))
    ref2 = _reference(x2, t2, smooth=0.001)
    assert jnp.allclose(out2, ref2, **TOL), (out2, ref2)

    # Case 3: force small tiles so each core runs a multi-step accumulation
    # loop (init at i == 0, accumulate for i > 0); different smooth value.
    x3 = jax.random.normal(k5, (8, 8, 32), dtype=jnp.float32)
    t3 = jax.random.randint(k6, (8, 8), 0, 32, dtype=jnp.int32)
    out3 = jax.block_until_ready(
        label_smooth_loss(x3, t3, smooth=0.01, max_rows_per_tile=8))
    ref3 = _reference(x3, t3, smooth=0.01)
    assert jnp.allclose(out3, ref3, **TOL), (out3, ref3)

    print("KERNEL_OK")
</pallas_src>

<mosaic_0001>
module attributes {stable_mosaic.version = 11 : i64} {
  func.func @_label_smooth_kernel(%arg0: i32, %arg1: i32, %arg2: memref<8x32xf32, #tpu.memory_space<vmem>>, %arg3: memref<8x1xi32, #tpu.memory_space<vmem>>, %arg4: memref<1x8x128xf32, #tpu.memory_space<vmem>>) attributes {dimension_semantics = [#tpu.dimension_semantics<parallel>, #tpu.dimension_semantics<arbitrary>], iteration_bounds = array<i64: 2, 1>, scalar_prefetch = 0 : i64, scratch_operands = 0 : i64, tpu.core_type = #tpu.core_type<tc>, window_params = [{transform_indices = @transform_0, window_bounds = array<i64: 8, 32>}, {transform_indices = @transform_1, window_bounds = array<i64: 8, 1>}, {transform_indices = @transform_2, window_bounds = array<i64: 1, 8, 128>}]} {
    %c0_i32 = arith.constant 0 : i32
    %0 = arith.cmpi eq, %arg1, %c0_i32 : i32
    %1 = arith.extui %0 : i1 to i32
    %c0_i32_0 = arith.constant 0 : i32
    %2 = arith.cmpi ne, %1, %c0_i32_0 : i32
    scf.if %2 {
      %cst_21 = arith.constant 0.000000e+00 : f32
      %53 = vector.broadcast %cst_21 : f32 to vector<1x8x128xf32>
      %c0_22 = arith.constant 0 : index
      %c0_23 = arith.constant 0 : index
      %c0_24 = arith.constant 0 : index
      %54 = vector.load %arg4[%c0_22, %c0_23, %c0_24] : memref<1x8x128xf32, #tpu.memory_space<vmem>>, vector<1x8x128xf32>
      tpu.vector_store %arg4[%c0_22, %c0_23, %c0_24], %53 {strides = array<i32>} : memref<1x8x128xf32, #tpu.memory_space<vmem>>, vector<1x8x128xf32>,
    } else {
    }
    %c0 = arith.constant 0 : index
    %c0_1 = arith.constant 0 : index
    %3 = vector.load %arg2[%c0, %c0_1] : memref<8x32xf32, #tpu.memory_space<vmem>>, vector<8x32xf32>
    %c0_2 = arith.constant 0 : index
    %c0_3 = arith.constant 0 : index
    %4 = vector.load %arg3[%c0_2, %c0_3] : memref<8x1xi32, #tpu.memory_space<vmem>>, vector<8x1xi32>
    %cst = arith.constant 1.000000e+00 : f32
    %5 = vector.broadcast %cst : f32 to vector<32x1xf32>
    %cst_4 = arith.constant dense<0xFF800000> : vector<8xf32>
    %6 = vector.multi_reduction <maximumf>, %3, %cst_4 [1] : vector<8x32xf32> to vector<8xf32>
    %7 = vector.shape_cast %6 : vector<8xf32> to vector<8x1xf32>
    %8 = tpu.iota {dimensions = array<i32: 1>} : vector<1x32xi32>
    %9 = vector.broadcast %8 : vector<1x32xi32> to vector<8x32xi32>
    %10 = vector.broadcast %4 : vector<8x1xi32> to vector<8x32xi32>
    %11 = arith.cmpi eq, %9, %10 : vector<8x32xi32>
    %cst_5 = arith.constant 0.000000e+00 : f32
    %12 = vector.broadcast %cst_5 : f32 to vector<8x32xf32>
    %13 = arith.select %11, %3, %12 : vector<8x32xi1>, vector<8x32xf32>
    %cst_6 = arith.constant dense<0.000000e+00> : vector<8xf32>
    %14 = vector.multi_reduction <add>, %13, %cst_6 [1] : vector<8x32xf32> to vector<8xf32>
    %15 = vector.shape_cast %14 : vector<8xf32> to vector<8x1xf32>
    %cst_7 = arith.constant dense<0.000000e+00> : vector<8x1xf32>
    %16 = tpu.matmul %3, %5, %cst_7 {dimension_numbers = #tpu.dot_dimension_numbers<[1], [0], [0], [1], [0, 0, 1, 1], [], []>} : vector<8x32xf32>, vector<32x1xf32>, vector<8x1xf32> -> vector<8x1xf32>
    %17 = vector.broadcast %7 : vector<8x1xf32> to vector<8x32xf32>
    %18 = arith.subf %3, %17 : vector<8x32xf32>
    %19 = math.exp %18 : vector<8x32xf32>
    %cst_8 = arith.constant dense<0.000000e+00> : vector<8x1xf32>
    %20 = tpu.matmul %19, %5, %cst_8 {dimension_numbers = #tpu.dot_dimension_numbers<[1], [0], [0], [1], [0, 0, 1, 1], [], []>} : vector<8x32xf32>, vector<32x1xf32>, vector<8x1xf32> -> vector<8x1xf32>
    %21 = math.log %20 : vector<8x1xf32>
    %22 = arith.subf %15, %7 : vector<8x1xf32>
    %23 = arith.subf %22, %21 : vector<8x1xf32>
    %24 = arith.addf %7, %21 : vector<8x1xf32>
    %cst_9 = arith.constant 3.200000e+01 : f32
    %25 = vector.broadcast %cst_9 : f32 to vector<8x1xf32>
    %26 = arith.mulf %25, %24 : vector<8x1xf32>
    %27 = arith.subf %16, %26 : vector<8x1xf32>
    %cst_10 = arith.constant 0.998967766 : f32
    %28 = vector.broadcast %cst_10 : f32 to vector<8x1xf32>
    %29 = arith.mulf %28, %23 : vector<8x1xf32>
    %cst_11 = arith.constant 3.22580636E-5 : f32
    %30 = vector.broadcast %cst_11 : f32 to vector<8x1xf32>
    %31 = arith.mulf %30, %27 : vector<8x1xf32>
    %32 = arith.addf %29, %31 : vector<8x1xf32>
    %cst_12 = arith.constant 0.000000e+00 : f32
    %33 = vector.broadcast %cst_12 : f32 to vector<8x1xf32>
    %34 = arith.subf %33, %32 : vector<8x1xf32>
    %c1_i32 = arith.constant 1 : i32
    %35 = arith.muli %arg0, %c1_i32 : i32
    %36 = arith.addi %35, %arg1 : i32
    %37 = tpu.iota {dimensions = array<i32: 0>} : vector<8x1xi32>
    %c8_i32 = arith.constant 8 : i32
    %38 = arith.muli %36, %c8_i32 : i32
    %39 = vector.broadcast %38 : i32 to vector<8x1xi32>
    %40 = arith.addi %37, %39 : vector<8x1xi32>
    %c10_i32 = arith.constant 10 : i32
    %41 = vector.broadcast %c10_i32 : i32 to vector<8x1xi32>
    %42 = arith.cmpi slt, %40, %41 : vector<8x1xi32>
    %cst_13 = arith.constant 0.000000e+00 : f32
    %43 = vector.broadcast %cst_13 : f32 to vector<8x1xf32>
    %44 = arith.select %42, %34, %43 : vector<8x1xi1>, vector<8x1xf32>
    %c0_14 = arith.constant 0 : index
    %c0_15 = arith.constant 0 : index
    %c0_16 = arith.constant 0 : index
    %45 = vector.load %arg4[%c0_14, %c0_15, %c0_16] : memref<1x8x128xf32, #tpu.memory_space<vmem>>, vector<1x8x128xf32>
    %46 = vector.shape_cast %44 : vector<8x1xf32> to vector<1x8x1xf32>
    %cst_17 = arith.constant dense<0.000000e+00> : vector<1xf32>
    %47 = vector.multi_reduction <add>, %46, %cst_17 [1, 2] : vector<1x8x1xf32> to vector<1xf32>
    %48 = vector.shape_cast %47 : vector<1xf32> to vector<1x1x1xf32>
    %49 = vector.extract %48[0, 0, 0] : f32 from vector<1x1x1xf32>
    %50 = vector.broadcast %49 : f32 to vector<1x8x128xf32>
    %51 = arith.addf %45, %50 : vector<1x8x128xf32>
    %c0_18 = arith.constant 0 : index
    %c0_19 = arith.constant 0 : index
    %c0_20 = arith.constant 0 : index
    %52 = vector.load %arg4[%c0_18, %c0_19, %c0_20] : memref<1x8x128xf32, #tpu.memory_space<vmem>>, vector<1x8x128xf32>
    tpu.vector_store %arg4[%c0_18, %c0_19, %c0_20], %51 {strides = array<i32>} : memref<1x8x128xf32, #tpu.memory_space<vmem>>, vector<1x8x128xf32>,
    return
  }
  func.func @transform_0(%arg0: i32, %arg1: i32) -> (i32, i32) {
    %c1_i32 = arith.constant 1 : i32
    %0 = arith.muli %arg0, %c1_i32 : i32
    %1 = arith.addi %0, %arg1 : i32
    %c1_i32_0 = arith.constant 1 : i32
    %2 = arith.minsi %1, %c1_i32_0 : i32
    %c0_i32 = arith.constant 0 : i32
    %c0_i32_1 = arith.constant 0 : i32
    return %2, %c0_i32 : i32, i32
  }
  func.func @transform_1(%arg0: i32, %arg1: i32) -> (i32, i32) {
    %c1_i32 = arith.constant 1 : i32
    %0 = arith.muli %arg0, %c1_i32 : i32
    %1 = arith.addi %0, %arg1 : i32
    %c1_i32_0 = arith.constant 1 : i32
    %2 = arith.minsi %1, %c1_i32_0 : i32
    %c0_i32 = arith.constant 0 : i32
    %c0_i32_1 = arith.constant 0 : i32
    return %2, %c0_i32 : i32, i32
  }
  func.func @transform_2(%arg0: i32, %arg1: i32) -> (i32, i32, i32) {
    %c0_i32 = arith.constant 0 : i32
    %c0_i32_0 = arith.constant 0 : i32
    %c0_i32_1 = arith.constant 0 : i32
    return %arg0, %c0_i32, %c0_i32_0 : i32, i32, i32
  }
}

</mosaic_0001>

<llo_original>
// kernel: tpu_custom_call.1
$region0: #{tpu_custom_call.1}
  #allocation0 [shape = 'u32[]', space=smem, size = 0x4, offset = 0x4, fixed_abs, tag = 'smem constant byte address 0x4 - core index']
  #allocation1 [shape = 'u32[144,128]{1,0:T(1,128)}', space=vmem, size = 0x12000, scoped, tag = 'internal scratch']
  %s0 = inlined_call_operand.vmem [shape: f32[10,32], index: 0, kind: input, shape index: {}]
  %s1 = inlined_call_operand.vmem [shape: s32[10,1], index: 1, kind: input, shape index: {}]
  %s2 = inlined_call_operand.hbm [shape: f32[2,8,128], index: 2, kind: output, shape index: {}]
  %s3 = sld [smem:[#allocation0]]
  $region45: #{tpu_custom_call.1} parent=0
    _
  %s5 = ssub.s32 1, %s3
  %s6 = scalar_select 0, %s5, %s3
  $region1: #{tpu_custom_call.1} parent=0
    #allocation2 [shape = 'u8[8192]{0}', space=vmem, size = 0x2000, scoped, tag = 'output window, operand 0']
    #allocation3 [shape = 's32[2]{0}', space=sflag, size = 0x8, scoped, tag = 'scoped memory for tpu_custom_call.1']
    %7 = vsyncpa [#allocation3], 0
    %s8 = scalar_lea.sflag [#allocation3], 1
    %9 = vsyncpa %s8, 0
    loop: start=0, step=1, limit=4
    $region2: #{tpu_custom_call.1} parent=1 // loop_pre_header
      _
    $region3: #{tpu_custom_call.1} parent=1 // loop_header
      %s11 = sphi 0, %s15
      %p12 = scmp.ge.s32.totalorder %s11, 4
      %s18 = sphi 0, %s30
      %s19 = sphi 0, %s26
      %s20 = sphi 0, %s18
      %s21 = sphi 0, %s19
      %s22 = sphi 0, %s20
      %s23 = sphi 0, %s21
      %s39 = sphi 0, %s41
      %s42 = sphi 0, %s39
      %s43 = sphi 0, %s42
      %s59 = sphi 0, %s43
      %s71 = sphi 0, %s73
      %s74 = sphi 0, %s71
      %s75 = sphi 0, %s74
      %s91 = sphi 0, %s75
      %s97 = sphi 0, %s99
      %s100 = sphi 0, %s97
      %s101 = sphi 0, %s100
      %s117 = sphi 0, %s101
    $region4: #{tpu_custom_call.1} parent=1 // loop_header_branch
      %14 = sbr.rel (%p12) target = $region8
    $region5: #{tpu_custom_call.1} parent=1 // loop_body
      %s16 = ssub.s32 %s11, 1
      %s17 = ssub.s32 %s11, 2
      %s24 = sadd.s32 1, %s19
      %p25 = scmp.ge.s32.totalorder %s24, 1
      %s26 = scalar_select %p25, 0, %s24
      %s27 = sadd.s32 1, %s18
      %s28 = scalar_select %p25, %s27, %s18
      %p29 = scmp.ge.s32.totalorder %s28, 2
      %s30 = scalar_select %p29, 0, %s28
      %s31 = sadd.s32 %s18, %s19
      %p32 = scmp.lt.s32.totalorder %s31, 1
      %s33 = scalar_select %p32, %s31, 1
      %s34 = sadd.s32 %s30, %s26
      %p35 = scmp.lt.s32.totalorder %s34, 1
      %s36 = scalar_select %p35, %s34, 1
      %s37 = ssub.s32 %s33, %s36
      %p38 = scmp.eq.s32.totalorder %s37, 0
      %s40 = sadd.s32 %s39, 1
      %s41 = scalar_select %p38, %s39, %s40
      %p44 = pneg %p38
      %p45 = scmp.eq.s32.totalorder %s11, 1
      %p46 = por %p44, %p45
      %p47 = scmp.ne.s32.totalorder %s39, %s42
      %p48 = scmp.eq.s32.totalorder %s11, 0
      %p49 = por %p47, %p48
      %p50 = scmp.ne.s32.totalorder %s39, %s42
      %p51 = scmp.eq.s32.totalorder %s16, 1
      %p52 = por %p50, %p51
      %p53 = scmp.ne.s32.totalorder %s42, %s43
      %p54 = scmp.eq.s32.totalorder %s16, 0
      %p55 = por %p53, %p54
      %p56 = scmp.ne.s32.totalorder %s42, %s43
      %p57 = scmp.eq.s32.totalorder %s17, 1
      %p58 = por %p56, %p57
      %p60 = scmp.ne.s32.totalorder %s43, %s59
      %p61 = scmp.eq.s32.totalorder %s17, 0
      %p62 = por %p60, %p61
      %s63 = sadd.s32 %s18, %s19
      %p64 = scmp.lt.s32.totalorder %s63, 1
      %s65 = scalar_select %p64, %s63, 1
      %s66 = sadd.s32 %s30, %s26
      %p67 = scmp.lt.s32.totalorder %s66, 1
      %s68 = scalar_select %p67, %s66, 1
      %s69 = ssub.s32 %s65, %s68
      %p70 = scmp.eq.s32.totalorder %s69, 0
      %s72 = sadd.s32 %s71, 1
      %s73 = scalar_select %p70, %s71, %s72
      %p76 = pneg %p70
      %p77 = scmp.eq.s32.totalorder %s11, 1
      %p78 = por %p76, %p77
      %p79 = scmp.ne.s32.totalorder %s71, %s74
      %p80 = scmp.eq.s32.totalorder %s11, 0
      %p81 = por %p79, %p80
      %p82 = scmp.ne.s32.totalorder %s71, %s74
      %p83 = scmp.eq.s32.totalorder %s16, 1
      %p84 = por %p82, %p83
      %p85 = scmp.ne.s32.totalorder %s74, %s75
      %p86 = scmp.eq.s32.totalorder %s16, 0
      %p87 = por %p85, %p86
      %p88 = scmp.ne.s32.totalorder %s74, %s75
      %p89 = scmp.eq.s32.totalorder %s17, 1
      %p90 = por %p88, %p89
      %p92 = scmp.ne.s32.totalorder %s75, %s91
      %p93 = scmp.eq.s32.totalorder %s17, 0
      %p94 = por %p92, %p93
      %s95 = ssub.s32 %s18, %s30
      %p96 = scmp.eq.s32.totalorder %s95, 0
      %s98 = sadd.s32 %s97, 1
      %s99 = scalar_select %p96, %s97, %s98
      %p102 = pneg %p96
      %p103 = scmp.eq.s32.totalorder %s11, 1
      %p104 = por %p102, %p103
      %p105 = scmp.ne.s32.totalorder %s97, %s100
      %p106 = scmp.eq.s32.totalorder %s11, 0
      %p107 = por %p105, %p106
      %p108 = scmp.ne.s32.totalorder %s97, %s100
      %p109 = scmp.eq.s32.totalorder %s16, 1
      %p110 = por %p108, %p109
      %p111 = scmp.ne.s32.totalorder %s100, %s101
      %p112 = scmp.eq.s32.totalorder %s16, 0
      %p113 = por %p111, %p112
      %p114 = scmp.ne.s32.totalorder %s100, %s101
      %p115 = scmp.eq.s32.totalorder %s17, 1
      %p116 = por %p114, %p115
      %p118 = scmp.ne.s32.totalorder %s101, %s117
      %p119 = scmp.eq.s32.totalorder %s17, 0
      %p120 = por %p118, %p119
      %p121 = scmp.le.s32.totalorder 1, %s11
      %p122 = scmp.lt.s32.totalorder %s11, 3
      %p123 = pnand %p121, %p122
      %p124 = pneg %p123
      // Predicated region
      $region9: #{tpu_custom_call.1} parent=5 // pred_check
        _
      $region10: #{tpu_custom_call.1} parent=5 // pred_check_branch
        %126 = sbr.rel (%p123) target = $region12
      $region11: #{tpu_custom_call.1} parent=5 // pred_region
        %s127 = ssub.s32 %s11, 1
      $region12: #{tpu_custom_call.1} parent=5 // pred_fallthru
        _
      %p128 = scmp.lt.s32.totalorder %s11, 2
      // Predicated region
      $region13: #{tpu_custom_call.1} parent=5 // pred_check
        %p129 = pneg %p128
      $region14: #{tpu_custom_call.1} parent=5 // pred_check_branch
        %131 = sbr.rel (%p129) target = $region16
      $region15: #{tpu_custom_call.1} parent=5 // pred_region
        // Predicated region
        $region17: #{tpu_custom_call.1} parent=15 // pred_check
          %p132 = pneg %p49
        $region18: #{tpu_custom_call.1} parent=15 // pred_check_branch
          %134 = sbr.rel (%p132) target = $region20
        $region19: #{tpu_custom_call.1} parent=15 // pred_region
          %s135 = sadd.s32 %s18, %s19
          %p136 = scmp.lt.s32.totalorder %s135, 1
          %s137 = scalar_select %p136, %s135, 1
          %p138 = scmp.lt.s32.totalorder %s137, 1
          %s139 = scalar_select %p138, %s137, 1
          %s140 = smul.addr %s139, 8
          %s141 = scalar_lea.vmem %s0, %s140
          %s142 = sadd.s32 %s18, %s19
          %p143 = scmp.lt.s32.totalorder %s142, 1
          %s144 = scalar_select %p143, %s142, 1
        $region20: #{tpu_custom_call.1} parent=15 // pred_fallthru
          _
        // Predicated region
        $region21: #{tpu_custom_call.1} parent=15 // pred_check
          %p145 = pneg %p81
        $region22: #{tpu_custom_call.1} parent=15 // pred_check_branch
          %147 = sbr.rel (%p145) target = $region24
        $region23: #{tpu_custom_call.1} parent=15 // pred_region
          %s148 = sadd.s32 %s18, %s19
          %p149 = scmp.lt.s32.totalorder %s148, 1
          %s150 = scalar_select %p149, %s148, 1
          %p151 = scmp.lt.s32.totalorder %s150, 1
          %s152 = scalar_select %p151, %s150, 1
          %s153 = smul.addr %s152, 8
          %s154 = scalar_lea.vmem %s1, %s153
          %s155 = sadd.s32 %s18, %s19
          %p156 = scmp.lt.s32.totalorder %s155, 1
          %s157 = scalar_select %p156, %s155, 1
        $region24: #{tpu_custom_call.1} parent=15 // pred_fallthru
          _
      $region16: #{tpu_custom_call.1} parent=5 // pred_fallthru
        _
      %p158 = scmp.le.s32.totalorder 1, %s11
      %p159 = scmp.lt.s32.totalorder %s11, 3
      %p160 = pnand %p158, %p159
      %p161 = pneg %p160
      // Predicated region
      $region25: #{tpu_custom_call.1} parent=5 // pred_check
        _
      $region26: #{tpu_custom_call.1} parent=5 // pred_check_branch
        %163 = sbr.rel (%p160) target = $region28
      $region27: #{tpu_custom_call.1} parent=5 // pred_region
        %s164 = ssub.s32 %s11, 1
        %s165 = sadd.s32 %s20, %s21
        %p166 = scmp.lt.s32.totalorder %s165, 1
        %s167 = scalar_select %p166, %s165, 1
        %p168 = scmp.lt.s32.totalorder %s167, 1
        %s169 = scalar_select %p168, %s167, 1
        %s170 = smul.addr %s169, 8
        %s171 = scalar_lea.vmem %s0, %s170
        %p172 = pneg %p55
        %p173 = pneg %p52
        %s174 = sadd.s32 %s20, %s21
        %p175 = scmp.lt.s32.totalorder %s174, 1
        %s176 = scalar_select %p175, %s174, 1
        %p177 = scmp.lt.s32.totalorder %s176, 1
        %s178 = scalar_select %p177, %s176, 1
        %s179 = smul.addr %s178, 8
        %s180 = scalar_lea.vmem %s1, %s179
        %p181 = pneg %p87
        %p182 = pneg %p84
        %p183 = pneg %p113
        %p184 = pneg %p110
        %s185 = sand.u32 %s100, 1
        %s186 = scalar_lea.sflag [#allocation3], %s185
        %s187 = sand.u32 %s100, 1
        %s188 = smul.addr %s187, 8
        %s189 = scalar_lea.vmem [#allocation2], %s188
        %s190 = sadd.s32 %s20, %s21
        %p191 = scmp.lt.s32.totalorder %s190, 1
        %s192 = scalar_select %p191, %s190, 1
        %p193 = scmp.lt.s32.totalorder %s192, 1
        %s194 = scalar_select %p193, %s192, 1
        %s195 = smul.addr %s194, 8
        %s196 = scalar_lea.vmem %s0, %s195
        %s197 = sadd.s32 %s20, %s21
        %p198 = scmp.lt.s32.totalorder %s197, 1
        %s199 = scalar_select %p198, %s197, 1
        %s200 = sadd.s32 %s20, %s21
        %p201 = scmp.lt.s32.totalorder %s200, 1
        %s202 = scalar_select %p201, %s200, 1
        %p203 = scmp.lt.s32.totalorder %s202, 1
        %s204 = scalar_select %p203, %s202, 1
        %s205 = smul.addr %s204, 8
        %s206 = scalar_lea.vmem %s1, %s205
        %s207 = sadd.s32 %s20, %s21
        %p208 = scmp.lt.s32.totalorder %s207, 1
        %s209 = scalar_select %p208, %s207, 1
        %p210 = scmp.eq.s32.totalorder %s21, 0
        // Predicated region
        $region29: #{tpu_custom_call.1} parent=27 // pred_check
          %p211 = pneg %p210
        $region30: #{tpu_custom_call.1} parent=27 // pred_check_branch
          %213 = sbr.rel (%p211) target = $region32
        $region31: #{tpu_custom_call.1} parent=27 // pred_region
          %214 = vst [vmem:[%s189] sm:$0xff] 0.0
        $region32: #{tpu_custom_call.1} parent=27 // pred_fallthru
          _
        %v215 = vld [vmem:[%s196] sm:$0xff]
        %v216 = vld [vmem:[%s206] sm:$0xff]
        %vm217 = vcmask 261120
        %v218 = vsel %vm217, %v215, -inf
        %219 = vmax.xlane.f32.xlu0 %v218
        %v220 = vpop.xlane.xlu0 %219
        %v221 = vlaneseq
        %v222 = vand.u32 %v221, 127
        %223 = vset.pattern.permute.xlu0 0
        %224 = vperm.xlu0 %223, %v216
        %v225 = vpop.permute.xlu0 %224
        %vm226 = vcmp.eq.s32.totalorder %v222, %v225
        %v227 = vsel %vm226, %v215, 0.0
        %v228 = vsel %vm217, %v227, 0.0
        %229 = vadd.xlane.f32.xlu0 %v228
        %v230 = vpop.xlane.xlu0 %229
        %v232 = vsel %vm217, %v215, 0
        %234 = vmatprep.subr.mxu0 0.0
        %235 = vmatpush1.msra.mxu0 0.0
        %236 = vmatprep.subr.mxu0 0.0
        %237 = vmatpush1.msra.mxu0 0.0
        %238 = vmatprep.subr.mxu0 0.0
        %239 = vmatpush1.msra.mxu0 0.0
        %240 = vmatprep.subr.mxu0 0.0
        %241 = vmatpush1.msra.mxu0 0.0
        %242 = vmatprep.subr.mxu0 0.0
        %243 = vmatpush1.msra.mxu0 0.0
        %244 = vmatprep.subr.mxu0 0.0
        %245 = vmatpush1.msra.mxu0 0.0
        %246 = vmatprep.subr.mxu0 0.0
        %247 = vmatpush1.msra.mxu0 0.0
        %248 = vmatprep.subr.mxu0 0.0
        %249 = vmatpush1.msra.mxu0 0.0
        %250 = vmatprep.subr.mxu0 0.0
        %251 = vmatpush1.msra.mxu0 0.0
        %252 = vmatprep.subr.mxu0 0.0
        %253 = vmatpush1.msra.mxu0 0.0
        %254 = vmatprep.subr.mxu0 0.0
        %255 = vmatpush1.msra.mxu0 0.0
        %256 = vmatprep.subr.mxu0 0.0
        %257 = vmatpush1.msra.mxu0 0.0
        %258 = vmatprep.subr.mxu0 0.0
        %259 = vmatpush1.msra.mxu0 1.0
        %260 = vmatprep.subr.mxu0 0.0
        %261 = vmatpush1.msra.mxu0 1.0
        %262 = vmatprep.subr.mxu0 0.0
        %263 = vmatpush1.msra.mxu0 1.0
        %264 = vmatprep.subr.mxu0 0.0
        %265 = vmatpush1.msra.mxu0 1.0
        %266 = vmatprep.subr.mxu0 0.0
        %267 = vmatpush2.msra.mxu0 0.0
        %268 = vmatprep.subr.mxu0 0.0
        %269 = vmatpush2.msra.mxu0 0.0
        %270 = vmatprep.subr.mxu0 0.0
        %271 = vmatpush2.msra.mxu0 0.0
        %272 = vmatprep.subr.mxu0 0.0
        %273 = vmatpush2.msra.mxu0 0.0
        %274 = vmatprep.subr.mxu0 0.0
        %275 = vmatpush2.msra.mxu0 0.0
        %276 = vmatprep.subr.mxu0 0.0
        %277 = vmatpush2.msra.mxu0 0.0
        %278 = vmatprep.subr.mxu0 0.0
        %279 = vmatpush2.msra.mxu0 0.0
        %280 = vmatprep.subr.mxu0 0.0
        %281 = vmatpush2.msra.mxu0 0.0
        %282 = vmatprep.subr.mxu0 0.0
        %283 = vmatpush2.msra.mxu0 0.0
        %284 = vmatprep.subr.mxu0 0.0
        %285 = vmatpush2.msra.mxu0 0.0
        %286 = vmatprep.subr.mxu0 0.0
        %287 = vmatpush2.msra.mxu0 0.0
        %288 = vmatprep.subr.mxu0 0.0
        %289 = vmatpush2.msra.mxu0 0.0
        %290 = vmatprep.subr.mxu0 0.0
        %291 = vmatpush2.msra.mxu0 0.0
        %292 = vmatprep.subr.mxu0 0.0
        %293 = vmatpush2.msra.mxu0 0.0
        %294 = vmatprep.subr.mxu0 0.0
        %295 = vmatpush2.msra.mxu0 0.0
        %296 = vmatprep.subr.mxu0 0.0
        %297 = vmatpush2.msra.mxu0 0.0
        %298 = vmatprep.mubr.f32.mxu0 0.0
        %299 = vmatmul.mubr.f32.gmra.mxu0 %v232
        %v300 = vpop.f32.mrf.mxu0
        %v301 = vadd.f32 0.0, %v300
        %v302 = vpop.f32.mrf.mxu0
        %303 = vdwg.mxu0
        %v304 = vsub.f32 %v215, %v220
        %v305 = vmul.f32 %v304, 1.442695
        %v306 = vpow.pop %v305
        %v308 = vsel %vm217, %v306, 0
        %310 = vmatprep.subr.mxu0 0.0
        %311 = vmatpush1.msra.mxu0 0.0
        %312 = vmatprep.subr.mxu0 0.0
        %313 = vmatpush1.msra.mxu0 0.0
        %314 = vmatprep.subr.mxu0 0.0
        %315 = vmatpush1.msra.mxu0 0.0
        %316 = vmatprep.subr.mxu0 0.0
        %317 = vmatpush1.msra.mxu0 0.0
        %318 = vmatprep.subr.mxu0 0.0
        %319 = vmatpush1.msra.mxu0 0.0
        %320 = vmatprep.subr.mxu0 0.0
        %321 = vmatpush1.msra.mxu0 0.0
        %322 = vmatprep.subr.mxu0 0.0
        %323 = vmatpush1.msra.mxu0 0.0
        %324 = vmatprep.subr.mxu0 0.0
        %325 = vmatpush1.msra.mxu0 0.0
        %326 = vmatprep.subr.mxu0 0.0
        %327 = vmatpush1.msra.mxu0 0.0
        %328 = vmatprep.subr.mxu0 0.0
        %329 = vmatpush1.msra.mxu0 0.0
        %330 = vmatprep.subr.mxu0 0.0
        %331 = vmatpush1.msra.mxu0 0.0
        %332 = vmatprep.subr.mxu0 0.0
        %333 = vmatpush1.msra.mxu0 0.0
        %334 = vmatprep.subr.mxu0 0.0
        %335 = vmatpush1.msra.mxu0 1.0
        %336 = vmatprep.subr.mxu0 0.0
        %337 = vmatpush1.msra.mxu0 1.0
        %338 = vmatprep.subr.mxu0 0.0
        %339 = vmatpush1.msra.mxu0 1.0
        %340 = vmatprep.subr.mxu0 0.0
        %341 = vmatpush1.msra.mxu0 1.0
        %342 = vmatprep.subr.mxu0 0.0
        %343 = vmatpush2.msra.mxu0 0.0
        %344 = vmatprep.subr.mxu0 0.0
        %345 = vmatpush2.msra.mxu0 0.0
        %346 = vmatprep.subr.mxu0 0.0
        %347 = vmatpush2.msra.mxu0 0.0
        %348 = vmatprep.subr.mxu0 0.0
        %349 = vmatpush2.msra.mxu0 0.0
        %350 = vmatprep.subr.mxu0 0.0
        %351 = vmatpush2.msra.mxu0 0.0
        %352 = vmatprep.subr.mxu0 0.0
        %353 = vmatpush2.msra.mxu0 0.0
        %354 = vmatprep.subr.mxu0 0.0
        %355 = vmatpush2.msra.mxu0 0.0
        %356 = vmatprep.subr.mxu0 0.0
        %357 = vmatpush2.msra.mxu0 0.0
        %358 = vmatprep.subr.mxu0 0.0
        %359 = vmatpush2.msra.mxu0 0.0
        %360 = vmatprep.subr.mxu0 0.0
        %361 = vmatpush2.msra.mxu0 0.0
        %362 = vmatprep.subr.mxu0 0.0
        %363 = vmatpush2.msra.mxu0 0.0
        %364 = vmatprep.subr.mxu0 0.0
        %365 = vmatpush2.msra.mxu0 0.0
        %366 = vmatprep.subr.mxu0 0.0
        %367 = vmatpush2.msra.mxu0 0.0
        %368 = vmatprep.subr.mxu0 0.0
        %369 = vmatpush2.msra.mxu0 0.0
        %370 = vmatprep.subr.mxu0 0.0
        %371 = vmatpush2.msra.mxu0 0.0
        %372 = vmatprep.subr.mxu0 0.0
        %373 = vmatpush2.msra.mxu0 0.0
        %374 = vmatprep.mubr.f32.mxu0 0.0
        %375 = vmatmul.mubr.f32.gmra.mxu0 %v308
        %v376 = vpop.f32.mrf.mxu0
        %v377 = vadd.f32 0.0, %v376
        %v378 = vpop.f32.mrf.mxu0
        %379 = vdwg.mxu0
        %v380 = vlog2.pop %v377
        %v381 = vmul.f32 %v380, 0.6931472
        %v382 = vsub.f32 %v230, %v220
        %v383 = vsub.f32 %v382, %v381
        %v384 = vadd.f32 %v220, %v381
        %v385 = vmul.f32 %v384, 32.0
        %v386 = vsub.f32 %v301, %v385
        %v387 = vmul.f32 %v383, 0.99896777
        %v388 = vmul.f32 %v386, 3.2258064e-05
        %v389 = vadd.f32 %v387, %v388
        %v390 = vsub.f32 0.0, %v389
        %s391 = sadd.s32 %s20, %s21
        %v392 = vlaneseq
        %v393 = vshrl.u32 %v392, 7
        %s394 = smul.u32 %s391, 8
        %v395 = vstv %s394
        %v396 = vadd.s32 %v393, %v395
        %vm397 = vcmp.lt.s32.totalorder %v396, 10
        %v398 = vsel %vm397, %v390, 0.0
        %v399 = vld [vmem:[%s189] sm:$0xff]
        %vm400 = vcmask 7168
        %v401 = vsel %vm400, %v398, 0.0
        %402 = vadd.xlane.f32.xlu0 %v401
        %v403 = vpop.xlane.xlu0 %402
        %v404 = vrot.slane %v403, 4
        %v405 = vadd.f32 %v403, %v404
        %v406 = vrot.slane %v405, 2
        %v407 = vadd.f32 %v405, %v406
        %v408 = vrot.slane %v407, 1
        %v409 = vadd.f32 %v407, %v408
        %s410 = vtos %v409
        %v411 = vstv %s410
        %v412 = vadd.f32 %v399, %v411
        %413 = vst [vmem:[%s189] sm:$0xff] %v412
        %s414 = sand.u32 %s100, 1
        %s415 = scalar_lea.sflag [#allocation3], %s414
        %s416 = sand.u32 %s100, 1
        %s417 = smul.addr %s416, 8
        %s418 = scalar_lea.vmem [#allocation2], %s417
        // Predicated region
        $region33: #{tpu_custom_call.1} parent=27 // pred_check
          %p419 = pneg %p110
        $region34: #{tpu_custom_call.1} parent=27 // pred_check_branch
          %421 = sbr.rel (%p419) target = $region36
        $region35: #{tpu_custom_call.1} parent=27 // pred_region
          %s423 = ssub.s32 128, 128
          %424 = vsyncadd %s415, %s423
          %s425 = smul.addr %s20, 128
          %s426 = scalar_lea.hbm %s2, %s425
          %s428 = sshll.u32 %s418, 4
          %s429 = int_to_ptr.vmem [resolvable:$true] %s428
          %431 = dma.vmem_to_hbm [thread:$0]  %s429, 128, %s426, %s415
        $region36: #{tpu_custom_call.1} parent=27 // pred_fallthru
          _
      $region28: #{tpu_custom_call.1} parent=5 // pred_fallthru
        _
      %p432 = scmp.le.s32.totalorder 2, %s11
      // Predicated region
      $region37: #{tpu_custom_call.1} parent=5 // pred_check
        %p433 = pneg %p432
      $region38: #{tpu_custom_call.1} parent=5 // pred_check_branch
        %435 = sbr.rel (%p433) target = $region40
      $region39: #{tpu_custom_call.1} parent=5 // pred_region
        %s436 = ssub.s32 %s11, 2
        // Predicated region
        $region41: #{tpu_custom_call.1} parent=39 // pred_check
          %p437 = pneg %p116
        $region42: #{tpu_custom_call.1} parent=39 // pred_check_branch
          %439 = sbr.rel (%p437) target = $region44
        $region43: #{tpu_custom_call.1} parent=39 // pred_region
          %s440 = sand.u32 %s101, 1
          %s441 = scalar_lea.sflag [#allocation3], %s440
          %s442 = sand.u32 %s101, 1
          %s443 = smul.addr %s442, 8
          %s444 = scalar_lea.vmem [#allocation2], %s443
          %445 = dma.done %s441, 128
        $region44: #{tpu_custom_call.1} parent=39 // pred_fallthru
          _
      $region40: #{tpu_custom_call.1} parent=5 // pred_fallthru
        _
    $region6: #{tpu_custom_call.1} parent=1 // loop_footer
      %s15 = sadd.s32 1, %s11
    $region7: #{tpu_custom_call.1} parent=1 // loop_footer_branch
      %10 = sbr.rel target = $region3
    $region8: #{tpu_custom_call.1} parent=1 // loop_exit
      _
    %446 = vsyncpa [#allocation3], 1
    %s447 = scalar_lea.sflag [#allocation3], 1
    %448 = vsyncpa %s447, 1

</llo_original>
